<compile_context>
chip_gen: v5e
topology: v5e:2x2
jax: 0.10.0
libtpu: 0.0.40
codegen_flags: <defaults>
</compile_context>

<pallas_src>
import functools
import math

import jax
import jax.numpy as jnp
from jax.experimental import pallas as pl
from jax.experimental.pallas import tpu as pltpu


def _softplus(x):
    # Matches torch.nn.functional.softplus(beta=1, threshold=20).
    return jnp.where(x > 20.0, x, jnp.log1p(jnp.exp(jnp.minimum(x, 20.0))))


def _round_up(n, m):
    return ((n + m - 1) // m) * m


def _default_block_b(batch, in_features, widths, x_itemsize):
    # Per-row VMEM footprint: double-buffered x row + a few f32 activation rows +
    # the out row; size the tile so the total stays <= ~24 MiB (comfortable under
    # v7x's 64 MiB VMEM, trivial on v5e/v6e's 128 MiB).
    row_bytes = 2 * in_features * x_itemsize + 3 * 4 * max(widths) + 2 * 4
    cap = max(128, min(32768, ((24 << 20) // row_bytes) // 128 * 128))
    if batch <= 2048:
        blk = _round_up(batch, 128)               # one step: per-step overhead dominates
    else:
        blk = _round_up(pl.cdiv(batch, 4), 128)   # >=4 steps -> each v7x TC still double-buffers
    return int(max(128, min(blk, cap)))


def _vmem_limit_bytes(block_b, in_features, widths, x_itemsize, param_bytes):
    x_tiles = 2 * block_b * in_features * x_itemsize   # double-buffered x tile
    out_tiles = 2 * block_b * 4                         # double-buffered (1, block_b) out
    temps = 3 * block_b * max(widths) * 4               # f32 layer intermediates / compiler temps
    total = x_tiles + out_tiles + temps + param_bytes + (4 << 20)
    return int(min(max(total, 16 << 20), 64 << 20))


def _make_mlp_kernel(num_linear, compute_dtype):
    """Kernel refs: (x_ref, w0, b0, ..., w_last, b_last, out_ref).

    Weights are in PyTorch (out_i, in_i) layout, biases are (out_i, 1).
    Activations are kept batch-on-lanes: h has shape (out_i, block_b).
    """

    def kernel(*refs):
        x_ref = refs[0]
        out_ref = refs[-1]                 # (1, block_b) lane-dense output row
        params = refs[1:-1]

        x = x_ref[...]                     # (block_b, in_features)
        h = None
        for i in range(num_linear):
            w = params[2 * i][...]         # (out_i, in_i), already compute_dtype
            b = params[2 * i + 1][...]     # (out_i, 1) f32, broadcasts over lanes (batch)
            if i == 0:
                # (out0, in0) contracted with (block_b, in0) on the last dims ->
                # (out0, block_b).  q@k^T-style: the stationary operand (x) gets the
                # free MXU transpose, so batch lands on lanes with no XLU transpose.
                h = jax.lax.dot_general(
                    w, x.astype(compute_dtype),
                    (((1,), (1,)), ((), ())),
                    preferred_element_type=jnp.float32) + b
            else:
                if i <= num_linear - 2:
                    # nn.ReLU before each hidden Linear_i.  nn.Dropout is identity at
                    # inference time.
                    # TODO(synk): training-mode dropout (Bernoulli mask + 1/(1-p) scale)
                    # is not implemented.
                    h = jnp.maximum(h, 0.0)
                # (out_i, in_i) @ (in_i, block_b) -> (out_i, block_b), lane-dense.
                h = jnp.dot(w, h.astype(compute_dtype),
                            preferred_element_type=jnp.float32) + b

        out_ref[...] = _softplus(h)        # (1, block_b)

    return kernel


def init_net_params(key, input_size, layer_sizes):
    """Deterministic init mimicking nn.Linear defaults (uniform +-1/sqrt(fan_in)).

    Returns a flat list [w0, b0, w1, b1, ...] with w_i in PyTorch layout
    (out_i, in_i) and b_i of shape (out_i, 1).
    """
    dims = [input_size] + list(layer_sizes) + [1]
    params = []
    for i in range(len(dims) - 1):
        fan_in, fan_out = dims[i], dims[i + 1]
        bound = 1.0 / math.sqrt(fan_in)
        key, kw, kb = jax.random.split(key, 3)
        w = jax.random.uniform(kw, (fan_out, fan_in), jnp.float32, -bound, bound)
        b = jax.random.uniform(kb, (fan_out, 1), jnp.float32, -bound, bound)
        params += [w, b]
    return params


@functools.partial(jax.jit, static_argnames=("block_b", "compute_dtype"))
def net_forward(x, params, *, block_b=None, compute_dtype=jnp.float32):
    """Pallas forward pass of Net.  x: (B, input_size) f32/bf16 -> (B, 1) f32."""
    B, in_features = x.shape
    num_linear = len(params) // 2
    assert num_linear >= 2, "Net requires at least one hidden layer"
    widths = [params[2 * i].shape[0] for i in range(num_linear)]   # out dims per layer
    x_itemsize = jnp.dtype(x.dtype).itemsize

    if block_b is None:
        block_b = _default_block_b(B, in_features, widths, x_itemsize)
    block_b = max(128, _round_up(int(block_b), 128))   # 128-aligned -> unmasked lane stores
    nblocks = pl.cdiv(B, block_b)                      # partial last block, no wrapper pad

    # Weights pre-cast to compute_dtype (tiny, VMEM-resident); biases stay f32.
    kparams = []
    for i in range(num_linear):
        kparams.append(params[2 * i].astype(compute_dtype))
        kparams.append(params[2 * i + 1].astype(jnp.float32))
    param_bytes = sum(int(p.size) * jnp.dtype(p.dtype).itemsize for p in kparams)

    kernel = _make_mlp_kernel(num_linear, compute_dtype)

    # x / out are tiled over the batch; weights & biases are full-array blocks with a
    # constant index map, so they are fetched into VMEM once and reused every step.
    in_specs = [pl.BlockSpec((block_b, in_features), lambda i: (i, 0))]
    for p in kparams:
        in_specs.append(pl.BlockSpec(p.shape, lambda i: (0, 0)))
    out_spec = pl.BlockSpec((1, block_b), lambda i: (i, 0))

    out = pl.pallas_call(
        kernel,
        out_shape=jax.ShapeDtypeStruct((nblocks, block_b), jnp.float32),
        grid_spec=pltpu.PrefetchScalarGridSpec(
            num_scalar_prefetch=0,
            grid=(nblocks,),
            in_specs=in_specs,
            out_specs=out_spec,
        ),
        compiler_params=pltpu.CompilerParams(
            dimension_semantics=("parallel",),
            vmem_limit_bytes=_vmem_limit_bytes(block_b, in_features, widths,
                                               x_itemsize, param_bytes),
        ),
    )(x, *kparams)

    # Lane-dense slab -> (B, 1); junk rows from the partial last block are sliced off.
    return out.reshape(nblocks * block_b, 1)[:B]


def net_forward_ref(x, params):
    """Pure-JAX f32 reference mirroring the torch module (eval mode)."""
    num_linear = len(params) // 2
    h = x
    for i in range(num_linear):
        w, b = params[2 * i], params[2 * i + 1]      # (out, in), (out, 1)
        if 1 <= i <= num_linear - 2:
            h = jnp.maximum(h, 0.0)
        h = h @ w.T + b.reshape(1, -1)
    return _softplus(h)


if __name__ == "__main__":
    key = jax.random.PRNGKey(0)
    k_x, k_p = jax.random.split(key)

    input_size = 32
    layer_sizes = [64, 32]          # Net(input_size=32, layer_sizes=[64, 32])
    batch = 200                     # deliberately NOT a multiple of the 128 batch tile

    x = jax.random.normal(k_x, (batch, input_size), jnp.float32)
    params = init_net_params(k_p, input_size, layer_sizes)

    ref = net_forward_ref(x, params)

    # 1) f32, auto block_b (single 256-row tile; 56 junk tail rows sliced off).
    out = jax.block_until_ready(net_forward(x, params))
    assert out.shape == (batch, 1), out.shape
    err = float(jnp.max(jnp.abs(out - ref)))
    assert jnp.allclose(out, ref, atol=1e-4, rtol=1e-4), ("f32 mismatch", err)

    # 2) f32, forced block_b=128 -> 2 grid steps with a partial last block (no wrapper pad).
    out2 = jax.block_until_ready(net_forward(x, params, block_b=128))
    err2 = float(jnp.max(jnp.abs(out2 - ref)))
    assert jnp.allclose(out2, ref, atol=1e-4, rtol=1e-4), ("f32 tiled mismatch", err2)

    # 3) bf16 input + bf16 MXU compute (f32 accumulate): halves the dominant HBM stream.
    x_bf16 = x.astype(jnp.bfloat16)
    out3 = jax.block_until_ready(
        net_forward(x_bf16, params, compute_dtype=jnp.bfloat16))
    err3 = float(jnp.max(jnp.abs(out3 - ref)))
    assert jnp.allclose(out3, ref, atol=5e-2, rtol=5e-2), ("bf16 mismatch", err3)

    print("KERNEL_OK")
</pallas_src>

<mosaic_0001>
module attributes {stable_mosaic.version = 11 : i64} {
  func.func @kernel(%arg0: i32, %arg1: memref<256x32xf32, #tpu.memory_space<vmem>>, %arg2: memref<64x32xf32, #tpu.memory_space<vmem>>, %arg3: memref<64x1xf32, #tpu.memory_space<vmem>>, %arg4: memref<32x64xf32, #tpu.memory_space<vmem>>, %arg5: memref<32x1xf32, #tpu.memory_space<vmem>>, %arg6: memref<1x32xf32, #tpu.memory_space<vmem>>, %arg7: memref<1x1xf32, #tpu.memory_space<vmem>>, %arg8: memref<1x256xf32, #tpu.memory_space<vmem>>) attributes {dimension_semantics = [#tpu.dimension_semantics<parallel>], iteration_bounds = array<i64: 1>, scalar_prefetch = 0 : i64, scratch_operands = 0 : i64, tpu.core_type = #tpu.core_type<tc>, window_params = [{transform_indices = @transform_0, window_bounds = array<i64: 256, 32>}, {pipeline_mode = #tpu.pipeline_mode<synchronous>, transform_indices = @transform_1, window_bounds = array<i64: 64, 32>}, {pipeline_mode = #tpu.pipeline_mode<synchronous>, transform_indices = @transform_2, window_bounds = array<i64: 64, 1>}, {pipeline_mode = #tpu.pipeline_mode<synchronous>, transform_indices = @transform_3, window_bounds = array<i64: 32, 64>}, {pipeline_mode = #tpu.pipeline_mode<synchronous>, transform_indices = @transform_4, window_bounds = array<i64: 32, 1>}, {pipeline_mode = #tpu.pipeline_mode<synchronous>, transform_indices = @transform_5, window_bounds = array<i64: 1, 32>}, {pipeline_mode = #tpu.pipeline_mode<synchronous>, transform_indices = @transform_6, window_bounds = array<i64: 1, 1>}, {transform_indices = @transform_7, window_bounds = array<i64: 1, 256>}]} {
    %c0 = arith.constant 0 : index
    %c0_0 = arith.constant 0 : index
    %0 = vector.load %arg1[%c0, %c0_0] : memref<256x32xf32, #tpu.memory_space<vmem>>, vector<256x32xf32>
    %c0_1 = arith.constant 0 : index
    %c0_2 = arith.constant 0 : index
    %1 = vector.load %arg2[%c0_1, %c0_2] : memref<64x32xf32, #tpu.memory_space<vmem>>, vector<64x32xf32>
    %c0_3 = arith.constant 0 : index
    %c0_4 = arith.constant 0 : index
    %2 = vector.load %arg3[%c0_3, %c0_4] : memref<64x1xf32, #tpu.memory_space<vmem>>, vector<64x1xf32>
    %cst = arith.constant dense<0.000000e+00> : vector<64x256xf32>
    %3 = tpu.matmul %1, %0, %cst {dimension_numbers = #tpu.dot_dimension_numbers<[1], [1], [0], [0], [0, 0, 1, 0], [], []>} : vector<64x32xf32>, vector<256x32xf32>, vector<64x256xf32> -> vector<64x256xf32>
    %4 = vector.broadcast %2 : vector<64x1xf32> to vector<64x256xf32>
    %5 = arith.addf %3, %4 : vector<64x256xf32>
    %c0_5 = arith.constant 0 : index
    %c0_6 = arith.constant 0 : index
    %6 = vector.load %arg4[%c0_5, %c0_6] : memref<32x64xf32, #tpu.memory_space<vmem>>, vector<32x64xf32>
    %c0_7 = arith.constant 0 : index
    %c0_8 = arith.constant 0 : index
    %7 = vector.load %arg5[%c0_7, %c0_8] : memref<32x1xf32, #tpu.memory_space<vmem>>, vector<32x1xf32>
    %cst_9 = arith.constant 0.000000e+00 : f32
    %8 = vector.broadcast %cst_9 : f32 to vector<64x256xf32>
    %9 = arith.maximumf %5, %8 : vector<64x256xf32>
    %cst_10 = arith.constant dense<0.000000e+00> : vector<32x256xf32>
    %10 = tpu.matmul %6, %9, %cst_10 {dimension_numbers = #tpu.dot_dimension_numbers<[1], [0], [0], [1], [0, 0, 1, 1], [], []>} : vector<32x64xf32>, vector<64x256xf32>, vector<32x256xf32> -> vector<32x256xf32>
    %11 = vector.broadcast %7 : vector<32x1xf32> to vector<32x256xf32>
    %12 = arith.addf %10, %11 : vector<32x256xf32>
    %c0_11 = arith.constant 0 : index
    %c0_12 = arith.constant 0 : index
    %13 = vector.load %arg6[%c0_11, %c0_12] : memref<1x32xf32, #tpu.memory_space<vmem>>, vector<1x32xf32>
    %c0_13 = arith.constant 0 : index
    %c0_14 = arith.constant 0 : index
    %14 = vector.load %arg7[%c0_13, %c0_14] : memref<1x1xf32, #tpu.memory_space<vmem>>, vector<1x1xf32>
    %cst_15 = arith.constant dense<0.000000e+00> : vector<1x256xf32>
    %15 = tpu.matmul %13, %12, %cst_15 {dimension_numbers = #tpu.dot_dimension_numbers<[1], [0], [0], [1], [0, 0, 1, 1], [], []>} : vector<1x32xf32>, vector<32x256xf32>, vector<1x256xf32> -> vector<1x256xf32>
    %16 = vector.broadcast %14 : vector<1x1xf32> to vector<1x256xf32>
    %17 = arith.addf %15, %16 : vector<1x256xf32>
    %cst_16 = arith.constant 2.000000e+01 : f32
    %18 = vector.broadcast %cst_16 : f32 to vector<1x256xf32>
    %19 = arith.cmpf ogt, %17, %18 : vector<1x256xf32>
    %cst_17 = arith.constant 2.000000e+01 : f32
    %20 = vector.broadcast %cst_17 : f32 to vector<1x256xf32>
    %21 = arith.minimumf %17, %20 : vector<1x256xf32>
    %22 = math.exp %21 : vector<1x256xf32>
    %23 = math.log1p %22 : vector<1x256xf32>
    %24 = arith.select %19, %17, %23 : vector<1x256xi1>, vector<1x256xf32>
    %c0_18 = arith.constant 0 : index
    %c0_19 = arith.constant 0 : index
    %25 = vector.load %arg8[%c0_18, %c0_19] : memref<1x256xf32, #tpu.memory_space<vmem>>, vector<1x256xf32>
    tpu.vector_store %arg8[%c0_18, %c0_19], %24 {strides = array<i32>} : memref<1x256xf32, #tpu.memory_space<vmem>>, vector<1x256xf32>,
    return
  }
  func.func @transform_0(%arg0: i32) -> (i32, i32) {
    %c0_i32 = arith.constant 0 : i32
    %c0_i32_0 = arith.constant 0 : i32
    return %arg0, %c0_i32 : i32, i32
  }
  func.func @transform_1(%arg0: i32) -> (i32, i32) {
    %c0_i32 = arith.constant 0 : i32
    %c0_i32_0 = arith.constant 0 : i32
    %c0_i32_1 = arith.constant 0 : i32
    return %c0_i32, %c0_i32_0 : i32, i32
  }
  func.func @transform_2(%arg0: i32) -> (i32, i32) {
    %c0_i32 = arith.constant 0 : i32
    %c0_i32_0 = arith.constant 0 : i32
    %c0_i32_1 = arith.constant 0 : i32
    return %c0_i32, %c0_i32_0 : i32, i32
  }
  func.func @transform_3(%arg0: i32) -> (i32, i32) {
    %c0_i32 = arith.constant 0 : i32
    %c0_i32_0 = arith.constant 0 : i32
    %c0_i32_1 = arith.constant 0 : i32
    return %c0_i32, %c0_i32_0 : i32, i32
  }
  func.func @transform_4(%arg0: i32) -> (i32, i32) {
    %c0_i32 = arith.constant 0 : i32
    %c0_i32_0 = arith.constant 0 : i32
    %c0_i32_1 = arith.constant 0 : i32
    return %c0_i32, %c0_i32_0 : i32, i32
  }
  func.func @transform_5(%arg0: i32) -> (i32, i32) {
    %c0_i32 = arith.constant 0 : i32
    %c0_i32_0 = arith.constant 0 : i32
    %c0_i32_1 = arith.constant 0 : i32
    return %c0_i32, %c0_i32_0 : i32, i32
  }
  func.func @transform_6(%arg0: i32) -> (i32, i32) {
    %c0_i32 = arith.constant 0 : i32
    %c0_i32_0 = arith.constant 0 : i32
    %c0_i32_1 = arith.constant 0 : i32
    return %c0_i32, %c0_i32_0 : i32, i32
  }
  func.func @transform_7(%arg0: i32) -> (i32, i32) {
    %c0_i32 = arith.constant 0 : i32
    %c0_i32_0 = arith.constant 0 : i32
    return %arg0, %c0_i32 : i32, i32
  }
}

</mosaic_0001>

<llo_original>
// kernel: net_forward.1
$region0: #{net_forward.1}
  #allocation0 [shape = 'u32[]', space=smem, size = 0x4, offset = 0x4, fixed_abs, tag = 'smem constant byte address 0x4 - core index']
  #allocation1 [shape = 'u32[72,128]{1,0:T(1,128)}', space=vmem, size = 0x9000, scoped, tag = 'internal scratch']
  #allocation2 [shape = 'f32[1,1]{1,0:T(1,128)S(1)}', space=vmem, size = 0x200, scoped, tag = 'scoped memory for net_forward.1']
  %s0 = inlined_call_operand.vmem [shape: f32[200,32], index: 0, kind: input, shape index: {}]
  %s1 = inlined_call_operand.vmem [shape: f32[64,32], index: 1, kind: input, shape index: {}]
  %s2 = inlined_call_operand.vmem [shape: f32[64,1], index: 2, kind: input, shape index: {}]
  %s3 = inlined_call_operand.vmem [shape: f32[32,64], index: 3, kind: input, shape index: {}]
  %s4 = inlined_call_operand.vmem [shape: f32[32,1], index: 4, kind: input, shape index: {}]
  %s5 = inlined_call_operand.vmem [shape: f32[1,32], index: 5, kind: input, shape index: {}]
  %s6 = inlined_call_operand.<no memory space> [shape: f32[1,1], index: 6, kind: input, shape index: {}]
  %s7 = inlined_call_operand.vmem [shape: f32[1,256], index: 7, kind: output, shape index: {}]
  %s8 = sld [smem:[#allocation0]]
  $region38: #{net_forward.1} parent=0
    _
  %s10 = ssub.s32 1, %s8
  %s11 = scalar_select 0, %s10, %s8
  %v12 = vstv %s6
  %13 = vst [vmem:[#allocation2] sm:$0x1] %v12
  // Predicated region
  $region2: #{net_forward.1} parent=0 // pred_check
    _
  $region3: #{net_forward.1} parent=0 // pred_check_branch
    %15 = sbr.rel (0) target = $region5
  $region4: #{net_forward.1} parent=0 // pred_region
    _
  $region5: #{net_forward.1} parent=0 // pred_fallthru
    _
  // Predicated region
  $region6: #{net_forward.1} parent=0 // pred_check
    _
  $region7: #{net_forward.1} parent=0 // pred_check_branch
    %17 = sbr.rel (0) target = $region9
  $region8: #{net_forward.1} parent=0 // pred_region
    _
  $region9: #{net_forward.1} parent=0 // pred_fallthru
    _
  // Predicated region
  $region10: #{net_forward.1} parent=0 // pred_check
    _
  $region11: #{net_forward.1} parent=0 // pred_check_branch
    %19 = sbr.rel (0) target = $region13
  $region12: #{net_forward.1} parent=0 // pred_region
    _
  $region13: #{net_forward.1} parent=0 // pred_fallthru
    _
  // Predicated region
  $region14: #{net_forward.1} parent=0 // pred_check
    _
  $region15: #{net_forward.1} parent=0 // pred_check_branch
    %21 = sbr.rel (0) target = $region17
  $region16: #{net_forward.1} parent=0 // pred_region
    _
  $region17: #{net_forward.1} parent=0 // pred_fallthru
    _
  // Predicated region
  $region18: #{net_forward.1} parent=0 // pred_check
    _
  $region19: #{net_forward.1} parent=0 // pred_check_branch
    %23 = sbr.rel (0) target = $region21
  $region20: #{net_forward.1} parent=0 // pred_region
    _
  $region21: #{net_forward.1} parent=0 // pred_fallthru
    _
  // Predicated region
  $region22: #{net_forward.1} parent=0 // pred_check
    _
  $region23: #{net_forward.1} parent=0 // pred_check_branch
    %25 = sbr.rel (0) target = $region25
  $region24: #{net_forward.1} parent=0 // pred_region
    _
  $region25: #{net_forward.1} parent=0 // pred_fallthru
    _
  // Predicated region
  $region26: #{net_forward.1} parent=0 // pred_check
    _
  $region27: #{net_forward.1} parent=0 // pred_check_branch
    %27 = sbr.rel (0) target = $region29
  $region28: #{net_forward.1} parent=0 // pred_region
    _
  $region29: #{net_forward.1} parent=0 // pred_fallthru
    _
  %v28 = vld [vmem:[%s0] sm:$0xff]
  %v29 = vld [vmem:[%s0 + $0x8] sm:$0xff]
  %v30 = vld [vmem:[%s0 + $0x10] sm:$0xff]
  %v31 = vld [vmem:[%s0 + $0x18] sm:$0xff]
  %v32 = vld [vmem:[%s0 + $0x20] sm:$0xff]
  %v33 = vld [vmem:[%s0 + $0x28] sm:$0xff]
  %v34 = vld [vmem:[%s0 + $0x30] sm:$0xff]
  %v35 = vld [vmem:[%s0 + $0x38] sm:$0xff]
  %v36 = vld [vmem:[%s0 + $0x40] sm:$0xff]
  %v37 = vld [vmem:[%s0 + $0x48] sm:$0xff]
  %v38 = vld [vmem:[%s0 + $0x50] sm:$0xff]
  %v39 = vld [vmem:[%s0 + $0x58] sm:$0xff]
  %v40 = vld [vmem:[%s0 + $0x60] sm:$0xff]
  %v41 = vld [vmem:[%s0 + $0x68] sm:$0xff]
  %v42 = vld [vmem:[%s0 + $0x70] sm:$0xff]
  %v43 = vld [vmem:[%s0 + $0x78] sm:$0xff]
  %v44 = vld [vmem:[%s0 + $0x80] sm:$0xff]
  %v45 = vld [vmem:[%s0 + $0x88] sm:$0xff]
  %v46 = vld [vmem:[%s0 + $0x90] sm:$0xff]
  %v47 = vld [vmem:[%s0 + $0x98] sm:$0xff]
  %v48 = vld [vmem:[%s0 + $0xa0] sm:$0xff]
  %v49 = vld [vmem:[%s0 + $0xa8] sm:$0xff]
  %v50 = vld [vmem:[%s0 + $0xb0] sm:$0xff]
  %v51 = vld [vmem:[%s0 + $0xb8] sm:$0xff]
  %v52 = vld [vmem:[%s0 + $0xc0] sm:$0xff]
  %v53 = vld [vmem:[%s0 + $0xc8] sm:$0xff]
  %v54 = vld [vmem:[%s0 + $0xd0] sm:$0xff]
  %v55 = vld [vmem:[%s0 + $0xd8] sm:$0xff]
  %v56 = vld [vmem:[%s0 + $0xe0] sm:$0xff]
  %v57 = vld [vmem:[%s0 + $0xe8] sm:$0xff]
  %v58 = vld [vmem:[%s0 + $0xf0] sm:$0xff]
  %v59 = vld [vmem:[%s0 + $0xf8] sm:$0xff]
  %v60 = vld [vmem:[%s1] sm:$0xff]
  %v61 = vld [vmem:[%s1 + $0x8] sm:$0xff]
  %v62 = vld [vmem:[%s1 + $0x10] sm:$0xff]
  %v63 = vld [vmem:[%s1 + $0x18] sm:$0xff]
  %v64 = vld [vmem:[%s1 + $0x20] sm:$0xff]
  %v65 = vld [vmem:[%s1 + $0x28] sm:$0xff]
  %v66 = vld [vmem:[%s1 + $0x30] sm:$0xff]
  %v67 = vld [vmem:[%s1 + $0x38] sm:$0xff]
  %v68 = vld [vmem:[%s2] sm:$0xff]
  %v69 = vld [vmem:[%s2 + $0x8] sm:$0xff]
  %v70 = vld [vmem:[%s2 + $0x10] sm:$0xff]
  %v71 = vld [vmem:[%s2 + $0x18] sm:$0xff]
  %v72 = vld [vmem:[%s2 + $0x20] sm:$0xff]
  %v73 = vld [vmem:[%s2 + $0x28] sm:$0xff]
  %v74 = vld [vmem:[%s2 + $0x30] sm:$0xff]
  %v75 = vld [vmem:[%s2 + $0x38] sm:$0xff]
  %77 = vset.pattern.permute.xlu0 0
  %78 = vperm.xlu0 %77, %v68
  %v79 = vpop.permute.xlu0 %78
  %82 = vset.pattern.permute.xlu0 0
  %83 = vperm.xlu0 %82, %v69
  %v84 = vpop.permute.xlu0 %83
  %87 = vset.pattern.permute.xlu0 0
  %88 = vperm.xlu0 %87, %v70
  %v89 = vpop.permute.xlu0 %88
  %92 = vset.pattern.permute.xlu0 0
  %93 = vperm.xlu0 %92, %v71
  %v94 = vpop.permute.xlu0 %93
  %97 = vset.pattern.permute.xlu0 0
  %98 = vperm.xlu0 %97, %v72
  %v99 = vpop.permute.xlu0 %98
  %102 = vset.pattern.permute.xlu0 0
  %103 = vperm.xlu0 %102, %v73
  %v104 = vpop.permute.xlu0 %103
  %107 = vset.pattern.permute.xlu0 0
  %108 = vperm.xlu0 %107, %v74
  %v109 = vpop.permute.xlu0 %108
  %112 = vset.pattern.permute.xlu0 0
  %113 = vperm.xlu0 %112, %v75
  %v114 = vpop.permute.xlu0 %113
  %vm116 = vcmask 261120
  %v118 = vsel %vm116, %v60, 0
  %v121 = vsel %vm116, %v61, 0
  %v124 = vsel %vm116, %v62, 0
  %v127 = vsel %vm116, %v63, 0
  %v130 = vsel %vm116, %v64, 0
  %v133 = vsel %vm116, %v65, 0
  %v136 = vsel %vm116, %v66, 0
  %v139 = vsel %vm116, %v67, 0
  %v142 = vsel %vm116, %v28, 0
  %v145 = vsel %vm116, %v29, 0
  %v148 = vsel %vm116, %v30, 0
  %v151 = vsel %vm116, %v31, 0
  %v154 = vsel %vm116, %v32, 0
  %v157 = vsel %vm116, %v33, 0
  %v160 = vsel %vm116, %v34, 0
  %v163 = vsel %vm116, %v35, 0
  %v166 = vsel %vm116, %v36, 0
  %v169 = vsel %vm116, %v37, 0
  %v172 = vsel %vm116, %v38, 0
  %v175 = vsel %vm116, %v39, 0
  %v178 = vsel %vm116, %v40, 0
  %v181 = vsel %vm116, %v41, 0
  %v184 = vsel %vm116, %v42, 0
  %v187 = vsel %vm116, %v43, 0
  %v190 = vsel %vm116, %v44, 0
  %v193 = vsel %vm116, %v45, 0
  %v196 = vsel %vm116, %v46, 0
  %v199 = vsel %vm116, %v47, 0
  %v202 = vsel %vm116, %v48, 0
  %v205 = vsel %vm116, %v49, 0
  %v208 = vsel %vm116, %v50, 0
  %v211 = vsel %vm116, %v51, 0
  %v214 = vsel %vm116, %v52, 0
  %v217 = vsel %vm116, %v53, 0
  %v220 = vsel %vm116, %v54, 0
  %v223 = vsel %vm116, %v55, 0
  %v226 = vsel %vm116, %v56, 0
  %v229 = vsel %vm116, %v57, 0
  %v232 = vsel %vm116, %v58, 0
  %v235 = vsel %vm116, %v59, 0
  %237 = vmatpush.xpose.msra.mxu0 %v187
  %238 = vmatpush.xpose.msra.mxu0 %v184
  %239 = vmatpush.xpose.msra.mxu0 %v181
  %240 = vmatpush.xpose.msra.mxu0 %v178
  %241 = vmatpush.xpose.msra.mxu0 %v175
  %242 = vmatpush.xpose.msra.mxu0 %v172
  %243 = vmatpush.xpose.msra.mxu0 %v169
  %244 = vmatpush.xpose.msra.mxu0 %v166
  %245 = vmatpush.xpose.msra.mxu0 %v163
  %246 = vmatpush.xpose.msra.mxu0 %v160
  %247 = vmatpush.xpose.msra.mxu0 %v157
  %248 = vmatpush.xpose.msra.mxu0 %v154
  %249 = vmatpush.xpose.msra.mxu0 %v151
  %250 = vmatpush.xpose.msra.mxu0 %v148
  %251 = vmatpush.xpose.msra.mxu0 %v145
  %252 = vmatpush.xpose.msra.mxu0 %v142
  %253 = vmatmul.f32.gmra.mxu0 %v118
  %v254 = vpop.f32.mrf.mxu0
  %v255 = vadd.f32 %v79, %v254
  %256 = vmatmul.f32.gmra.mxu0 %v121
  %v257 = vpop.f32.mrf.mxu0
  %v258 = vadd.f32 %v84, %v257
  %259 = vmatmul.f32.gmra.mxu0 %v124
  %v260 = vpop.f32.mrf.mxu0
  %v261 = vadd.f32 %v89, %v260
  %262 = vmatmul.f32.gmra.mxu0 %v127
  %v263 = vpop.f32.mrf.mxu0
  %v264 = vadd.f32 %v94, %v263
  %265 = vmatmul.f32.gmra.mxu0 %v130
  %v266 = vpop.f32.mrf.mxu0
  %v267 = vadd.f32 %v99, %v266
  %268 = vmatmul.f32.gmra.mxu0 %v133
  %v269 = vpop.f32.mrf.mxu0
  %v270 = vadd.f32 %v104, %v269
  %271 = vmatmul.f32.gmra.mxu0 %v136
  %v272 = vpop.f32.mrf.mxu0
  %v273 = vadd.f32 %v109, %v272
  %274 = vmatmul.f32.gmra.mxu0 %v139
  %v275 = vpop.f32.mrf.mxu0
  %v276 = vadd.f32 %v114, %v275
  %277 = vdwg.mxu0
  %278 = vmatpush.xpose.msra.mxu0 %v235
  %279 = vmatpush.xpose.msra.mxu0 %v232
  %280 = vmatpush.xpose.msra.mxu0 %v229
  %281 = vmatpush.xpose.msra.mxu0 %v226
  %282 = vmatpush.xpose.msra.mxu0 %v223
  %283 = vmatpush.xpose.msra.mxu0 %v220
  %284 = vmatpush.xpose.msra.mxu0 %v217
  %285 = vmatpush.xpose.msra.mxu0 %v214
  %286 = vmatpush.xpose.msra.mxu0 %v211
  %287 = vmatpush.xpose.msra.mxu0 %v208
  %288 = vmatpush.xpose.msra.mxu0 %v205
  %289 = vmatpush.xpose.msra.mxu0 %v202
  %290 = vmatpush.xpose.msra.mxu0 %v199
  %291 = vmatpush.xpose.msra.mxu0 %v196
  %292 = vmatpush.xpose.msra.mxu0 %v193
  %293 = vmatpush.xpose.msra.mxu0 %v190
  %294 = vmatmul.f32.gmra.mxu0 %v118
  %v295 = vpop.f32.mrf.mxu0
  %v296 = vadd.f32 %v79, %v295
  %297 = vmatmul.f32.gmra.mxu0 %v121
  %v298 = vpop.f32.mrf.mxu0
  %v299 = vadd.f32 %v84, %v298
  %300 = vmatmul.f32.gmra.mxu0 %v124
  %v301 = vpop.f32.mrf.mxu0
  %v302 = vadd.f32 %v89, %v301
  %303 = vmatmul.f32.gmra.mxu0 %v127
  %v304 = vpop.f32.mrf.mxu0
  %v305 = vadd.f32 %v94, %v304
  %306 = vmatmul.f32.gmra.mxu0 %v130
  %v307 = vpop.f32.mrf.mxu0
  %v308 = vadd.f32 %v99, %v307
  %309 = vmatmul.f32.gmra.mxu0 %v133
  %v310 = vpop.f32.mrf.mxu0
  %v311 = vadd.f32 %v104, %v310
  %312 = vmatmul.f32.gmra.mxu0 %v136
  %v313 = vpop.f32.mrf.mxu0
  %v314 = vadd.f32 %v109, %v313
  %315 = vmatmul.f32.gmra.mxu0 %v139
  %v316 = vpop.f32.mrf.mxu0
  %v317 = vadd.f32 %v114, %v316
  %318 = vdwg.mxu0
  %v319 = vld [vmem:[%s3] sm:$0xff]
  %v320 = vld [vmem:[%s3 + $0x8] sm:$0xff]
  %v321 = vld [vmem:[%s3 + $0x10] sm:$0xff]
  %v322 = vld [vmem:[%s3 + $0x18] sm:$0xff]
  %v323 = vld [vmem:[%s4] sm:$0xff]
  %v324 = vld [vmem:[%s4 + $0x8] sm:$0xff]
  %v325 = vld [vmem:[%s4 + $0x10] sm:$0xff]
  %v326 = vld [vmem:[%s4 + $0x18] sm:$0xff]
  %v327 = vmax.f32 %v255, 0.0
  %v328 = vmax.f32 %v296, 0.0
  %v329 = vmax.f32 %v258, 0.0
  %v330 = vmax.f32 %v299, 0.0
  %v331 = vmax.f32 %v261, 0.0
  %v332 = vmax.f32 %v302, 0.0
  %v333 = vmax.f32 %v264, 0.0
  %v334 = vmax.f32 %v305, 0.0
  %v335 = vmax.f32 %v267, 0.0
  %v336 = vmax.f32 %v308, 0.0
  %v337 = vmax.f32 %v270, 0.0
  %v338 = vmax.f32 %v311, 0.0
  %v339 = vmax.f32 %v273, 0.0
  %v340 = vmax.f32 %v314, 0.0
  %v341 = vmax.f32 %v276, 0.0
  %v342 = vmax.f32 %v317, 0.0
  %344 = vset.pattern.permute.xlu0 0
  %345 = vperm.xlu0 %344, %v323
  %v346 = vpop.permute.xlu0 %345
  %349 = vset.pattern.permute.xlu0 0
  %350 = vperm.xlu0 %349, %v324
  %v351 = vpop.permute.xlu0 %350
  %354 = vset.pattern.permute.xlu0 0
  %355 = vperm.xlu0 %354, %v325
  %v356 = vpop.permute.xlu0 %355
  %359 = vset.pattern.permute.xlu0 0
  %360 = vperm.xlu0 %359, %v326
  %v361 = vpop.permute.xlu0 %360
  %vm363 = vcmask 523264
  %v365 = vsel %vm363, %v319, 0
  %v368 = vsel %vm363, %v320, 0
  %v371 = vsel %vm363, %v321, 0
  %v374 = vsel %vm363, %v322, 0
  %376 = vmatpush.msra.mxu0 0.0
  %377 = vmatpush.msra.mxu0 0.0
  %378 = vmatpush.msra.mxu0 0.0
  %379 = vmatpush.msra.mxu0 0.0
  %380 = vmatpush.msra.mxu0 0.0
  %381 = vmatpush.msra.mxu0 0.0
  %382 = vmatpush.msra.mxu0 0.0
  %383 = vmatpush.msra.mxu0 0.0
  %384 = vmatpush.msra.mxu0 %v341
  %385 = vmatpush.msra.mxu0 %v339
  %386 = vmatpush.msra.mxu0 %v337
  %387 = vmatpush.msra.mxu0 %v335
  %388 = vmatpush.msra.mxu0 %v333
  %389 = vmatpush.msra.mxu0 %v331
  %390 = vmatpush.msra.mxu0 %v329
  %391 = vmatpush.msra.mxu0 %v327
  %392 = vmatmul.f32.gmra.mxu0 %v365
  %v393 = vpop.f32.mrf.mxu0
  %v394 = vadd.f32 %v346, %v393
  %395 = vmatmul.f32.gmra.mxu0 %v368
  %v396 = vpop.f32.mrf.mxu0
  %v397 = vadd.f32 %v351, %v396
  %398 = vmatmul.f32.gmra.mxu0 %v371
  %v399 = vpop.f32.mrf.mxu0
  %v400 = vadd.f32 %v356, %v399
  %401 = vmatmul.f32.gmra.mxu0 %v374
  %v402 = vpop.f32.mrf.mxu0
  %v403 = vadd.f32 %v361, %v402
  %404 = vdwg.mxu0
  %405 = vmatpush.msra.mxu0 0.0
  %406 = vmatpush.msra.mxu0 0.0
  %407 = vmatpush.msra.mxu0 0.0
  %408 = vmatpush.msra.mxu0 0.0
  %409 = vmatpush.msra.mxu0 0.0
  %410 = vmatpush.msra.mxu0 0.0
  %411 = vmatpush.msra.mxu0 0.0
  %412 = vmatpush.msra.mxu0 0.0
  %413 = vmatpush.msra.mxu0 %v342
  %414 = vmatpush.msra.mxu0 %v340
  %415 = vmatpush.msra.mxu0 %v338
  %416 = vmatpush.msra.mxu0 %v336
  %417 = vmatpush.msra.mxu0 %v334
  %418 = vmatpush.msra.mxu0 %v332
  %419 = vmatpush.msra.mxu0 %v330
  %420 = vmatpush.msra.mxu0 %v328
  %421 = vmatmul.f32.gmra.mxu0 %v365
  %v422 = vpop.f32.mrf.mxu0
  %v423 = vadd.f32 %v346, %v422
  %424 = vmatmul.f32.gmra.mxu0 %v368
  %v425 = vpop.f32.mrf.mxu0
  %v426 = vadd.f32 %v351, %v425
  %427 = vmatmul.f32.gmra.mxu0 %v371
  %v428 = vpop.f32.mrf.mxu0
  %v429 = vadd.f32 %v356, %v428
  %430 = vmatmul.f32.gmra.mxu0 %v374
  %v431 = vpop.f32.mrf.mxu0
  %v432 = vadd.f32 %v361, %v431
  %433 = vdwg.mxu0
  %v434 = vld [vmem:[%s5] sm:$0x1]
  %v435 = vld [vmem:[#allocation2] sm:$0x1]
  %437 = vset.pattern.permute.xlu0 0
  %438 = vperm.xlu0 %437, %v435
  %v439 = vpop.permute.xlu0 %438
  %v441 = vperm.slane %v439, 0
  %v443 = vsel %vm116, %v434, 0
  %445 = vmatpush.msra.mxu0 0.0
  %446 = vmatpush.msra.mxu0 0.0
  %447 = vmatpush.msra.mxu0 0.0
  %448 = vmatpush.msra.mxu0 0.0
  %449 = vmatpush.msra.mxu0 0.0
  %450 = vmatpush.msra.mxu0 0.0
  %451 = vmatpush.msra.mxu0 0.0
  %452 = vmatpush.msra.mxu0 0.0
  %453 = vmatpush.msra.mxu0 0.0
  %454 = vmatpush.msra.mxu0 0.0
  %455 = vmatpush.msra.mxu0 0.0
  %456 = vmatpush.msra.mxu0 0.0
  %457 = vmatpush.msra.mxu0 %v403
  %458 = vmatpush.msra.mxu0 %v400
  %459 = vmatpush.msra.mxu0 %v397
  %460 = vmatpush.msra.mxu0 %v394
  %461 = vmatmul.f32.gmra.mxu0 %v443
  %v462 = vpop.f32.mrf.mxu0
  %v463 = vadd.f32 %v441, %v462
  %464 = vdwg.mxu0
  %465 = vmatpush.msra.mxu0 0.0
  %466 = vmatpush.msra.mxu0 0.0
  %467 = vmatpush.msra.mxu0 0.0
  %468 = vmatpush.msra.mxu0 0.0
  %469 = vmatpush.msra.mxu0 0.0
  %470 = vmatpush.msra.mxu0 0.0
  %471 = vmatpush.msra.mxu0 0.0
  %472 = vmatpush.msra.mxu0 0.0
  %473 = vmatpush.msra.mxu0 0.0
  %474 = vmatpush.msra.mxu0 0.0
  %475 = vmatpush.msra.mxu0 0.0
  %476 = vmatpush.msra.mxu0 0.0
  %477 = vmatpush.msra.mxu0 %v432
  %478 = vmatpush.msra.mxu0 %v429
  %479 = vmatpush.msra.mxu0 %v426
  %480 = vmatpush.msra.mxu0 %v423
  %481 = vmatmul.f32.gmra.mxu0 %v443
  %v482 = vpop.f32.mrf.mxu0
  %v483 = vadd.f32 %v441, %v482
  %484 = vdwg.mxu0
  %vm485 = vcmp.gt.f32.partialorder %v463, 20.0
  %vm486 = vcmp.gt.f32.partialorder %v483, 20.0
  %v487 = vmin.f32 %v463, 20.0
  %v488 = vmin.f32 %v483, 20.0
  %v489 = vmul.f32 %v487, 1.442695
  %v490 = vpow.pop %v489
  %v491 = vmul.f32 %v488, 1.442695
  %v492 = vpow.pop %v491
  %v493 = vadd.f32 %v490, 1.0
  %v494 = vlog2.pop %v493
  %v495 = vmul.f32 %v494, 0.6931472
  %v496 = vmul.f32 -0.5, %v490
  %v497 = vadd.f32 %v496, 1.0
  %v498 = vmul.f32 %v497, %v490
  %v499 = vand.u32 2147483647, %v490
  %vm500 = vcmp.lt.f32.partialorder %v499, 0.0004427343
  %v501 = vsel %vm500, %v498, %v495
  %v502 = vadd.f32 %v492, 1.0
  %v503 = vlog2.pop %v502
  %v504 = vmul.f32 %v503, 0.6931472
  %v505 = vmul.f32 -0.5, %v492
  %v506 = vadd.f32 %v505, 1.0
  %v507 = vmul.f32 %v506, %v492
  %v508 = vand.u32 2147483647, %v492
  %vm509 = vcmp.lt.f32.partialorder %v508, 0.0004427343
  %v510 = vsel %vm509, %v507, %v504
  %v511 = vsel %vm485, %v463, %v501
  %v512 = vsel %vm486, %v483, %v510
  %v515 = vrot.slane %v512, 7
  %vm516 = vcmask 1040384
  %v517 = vsel %vm516, %v511, %v515
  %v519 = vlaneseq
  %vm520 = vcmp.ge.s32.totalorder %v519, 0
  %vm521 = vcmp.lt.s32.totalorder %v519, 256
  %vm522 = vmand %vm520, %vm521
  %523 = vst.msk [vmem:[%s7] sm:$0x3] %vm522, %v517
  // Predicated region
  $region30: #{net_forward.1} parent=0 // pred_check
    _
  $region31: #{net_forward.1} parent=0 // pred_check_branch
    %525 = sbr.rel (0) target = $region33
  $region32: #{net_forward.1} parent=0 // pred_region
    _
  $region33: #{net_forward.1} parent=0 // pred_fallthru
    _
  // Predicated region
  $region34: #{net_forward.1} parent=0 // pred_check
    _
  $region35: #{net_forward.1} parent=0 // pred_check_branch
    %527 = sbr.rel (0) target = $region37
  $region36: #{net_forward.1} parent=0 // pred_region
    _
  $region37: #{net_forward.1} parent=0 // pred_fallthru
    _

</llo_original>
